<compile_context>
chip_gen: v7x
topology: tpu7x:2x2x1
jax: 0.10.0
libtpu: 0.0.40
codegen_flags: <defaults>
</compile_context>

<pallas_src>
import functools
import math

import numpy as np
import jax
import jax.numpy as jnp
from jax.experimental import pallas as pl
from jax.experimental.pallas import tpu as pltpu


# ----------------------------------------------------------------------------
# Pallas kernel: one row-tile of a SignedAttention layer
#   inputs per tile:
#     wh1_ref : (TM, 1)  f32   h @ a[:F]            (rows of this tile)
#     wh2_ref : (1, N)   f32   (h @ a[F:]).T        (all columns)
#     adj_ref : (TM, N)  int8  adjacency mask rows
#     xp_ref  : (N, F)   bf16  x @ fc_W[:F]   (resident across tiles)
#     xn_ref  : (N, F)   bf16  x @ fc_W[F:]   (resident across tiles)
#   output:
#     o_ref   : (TM, F)  f32
# ----------------------------------------------------------------------------
def _signed_attention_kernel(wh1_ref, wh2_ref, adj_ref, xp_ref, xn_ref, o_ref,
                             *, alpha, apply_elu, apply_sigmoid):
    z = wh1_ref[...] + wh2_ref[...]                    # (TM, N) broadcast
    e = jnp.where(z > 0, z, alpha * z)                 # LeakyReLU(alpha)

    mask = adj_ref[...].astype(jnp.float32) > 0        # int8 -> f32 -> bool
    neg_big = jnp.float32(-1.0e12)

    # masked logits computed once, reused by both softmaxes
    e_pos = jnp.where(mask, e, neg_big)
    e_neg = jnp.where(mask, -e, neg_big)

    p_pos = jnp.exp(e_pos - jnp.max(e_pos, axis=1, keepdims=True))
    p_neg = jnp.exp(e_neg - jnp.max(e_neg, axis=1, keepdims=True))
    inv_pos = pl.reciprocal(jnp.sum(p_pos, axis=1, keepdims=True), approx=True)
    inv_neg = pl.reciprocal(jnp.sum(p_neg, axis=1, keepdims=True), approx=True)

    # attention           = softmax(where(adj>0,  e, -1e12))
    # negative_attention  = -softmax(where(adj>0, -e, -1e12))  (sign handled by
    #                       subtracting the second matmul below)
    att = (p_pos * inv_pos).astype(jnp.bfloat16)       # (TM, N)
    natt = (p_neg * inv_neg).astype(jnp.bfloat16)      # (TM, N)

    # cat([att@x, natt_signed@x],1) @ fc_W
    #   == att @ (x @ fc_W[:F]) - natt @ (x @ fc_W[F:])
    out = (jnp.dot(att, xp_ref[...], preferred_element_type=jnp.float32)
           - jnp.dot(natt, xn_ref[...], preferred_element_type=jnp.float32))

    if apply_elu:                                      # F.elu (alpha = 1)
        out = jnp.where(out > 0, out, jnp.exp(out) - 1.0)
    if apply_sigmoid:                                  # torch.sigmoid of out_att
        out = 1.0 / (1.0 + jnp.exp(-out))

    o_ref[...] = out


def _choose_row_tile(n_rows, n_cols, feat, budget_bytes=28 * 1024 * 1024):
    """Largest row tile (multiple of 32, divides N) whose working set fits the budget."""
    for t in (512, 256, 128, 64, 32):
        if t <= n_rows and n_rows % t == 0:
            # rough per-tile VMEM: 2x int8 adj buffers + ~6 f32 (TM,N) temps
            # + 2 bf16 (TM,N) prob copies + resident xp/xn + output tile.
            cost = (t * n_cols * (2 * 1 + 6 * 4 + 2 * 2)
                    + 4 * n_cols * feat * 2 + 2 * t * feat * 4)
            if cost <= budget_bytes:
                return t
    return n_rows  # tiny graphs: single tile covering all rows


def signed_attention_pallas(x, adj_mask, W, a, fc_W, *, alpha, concat,
                            apply_sigmoid=False, row_sel=None, tm=None):
    """One SignedAttention layer.

    x:(N,F) f32, adj_mask:(N,N) int8, W:(F,F), a:(2F,1), fc_W:(2F,F).
    If row_sel is given, only those rows of the output are computed.
    """
    N, Fin = x.shape
    Fout = W.shape[1]
    assert Fin == Fout, "SignedAttention requires in_features == out_features"

    x = x.astype(jnp.float32)
    # Tiny parameter / GEMV glue in plain JAX (hoisted out of the hot kernel):
    v1 = W @ a[:Fout]                         # (F, 1)
    v2 = W @ a[Fout:]                         # (F, 1)
    wh1 = x @ v1                              # (N, 1)   == (x@W) @ a[:F]
    wh2 = (x @ v2).reshape(1, N)              # (1, N)   == ((x@W) @ a[F:]).T
    # Fold fc_W through x via associativity; feed the MXU bf16 operands.
    xp = (x @ fc_W[:Fout]).astype(jnp.bfloat16)   # (N, F)
    xn = (x @ fc_W[Fout:]).astype(jnp.bfloat16)   # (N, F)

    kernel = functools.partial(_signed_attention_kernel,
                               alpha=float(alpha),
                               apply_elu=bool(concat),
                               apply_sigmoid=bool(apply_sigmoid))

    if row_sel is not None:
        # Final layer: only |post_id| rows are consumed -> gather those rows and
        # run a single small program (block shapes == full array shapes).
        P = int(row_sel.shape[0])
        wh1_s = jnp.take(wh1, row_sel, axis=0)          # (P, 1)
        adj_s = jnp.take(adj_mask, row_sel, axis=0)     # (P, N) int8
        full = lambda shape: pl.BlockSpec(shape, lambda i: (0,) * len(shape))
        return pl.pallas_call(
            kernel,
            out_shape=jax.ShapeDtypeStruct((P, Fout), jnp.float32),
            grid=(1,),
            in_specs=[full((P, 1)), full((1, N)), full((P, N)),
                      full((N, Fout)), full((N, Fout))],
            out_specs=full((P, Fout)),
            compiler_params=pltpu.CompilerParams(
                dimension_semantics=("arbitrary",)),
        )(wh1_s, wh2, adj_s, xp, xn)

    TM = tm if tm is not None else _choose_row_tile(N, N, Fout)
    assert N % TM == 0 and (TM % 32 == 0 or TM == N), "bad row tile"
    grid = (N // TM,)

    # TODO(synk): with head_num > 1 the per-head outputs (F=32 lanes) could be
    # packed into one lane-dense (N, F*heads) slab; the runnable PyTorch config
    # forces head_num == 1 so there is nothing to pack here.
    return pl.pallas_call(
        kernel,
        out_shape=jax.ShapeDtypeStruct((N, Fout), jnp.float32),
        grid=grid,
        in_specs=[
            pl.BlockSpec((TM, 1), lambda i: (i, 0)),     # wh1 rows of this tile
            pl.BlockSpec((1, N), lambda i: (0, 0)),      # wh2 row (resident)
            pl.BlockSpec((TM, N), lambda i: (i, 0)),     # adj mask rows (int8)
            pl.BlockSpec((N, Fout), lambda i: (0, 0)),   # xp (resident)
            pl.BlockSpec((N, Fout), lambda i: (0, 0)),   # xn (resident)
        ],
        out_specs=pl.BlockSpec((TM, Fout), lambda i: (i, 0)),
        compiler_params=pltpu.CompilerParams(
            dimension_semantics=("parallel",),           # megacore on v7x
            vmem_limit_bytes=48 * 1024 * 1024),
    )(wh1, wh2, adj_mask, xp, xn)


# ----------------------------------------------------------------------------
# SignedGAT: parameters + forward
# ----------------------------------------------------------------------------
def xavier_uniform(key, shape, gain=1.414):
    fan_in, fan_out = shape[0], shape[1]
    limit = gain * math.sqrt(6.0 / (fan_in + fan_out))
    return jax.random.uniform(key, shape, jnp.float32, -limit, limit)


def make_signed_attention_params(key, in_features, out_features):
    k1, k2, k3 = jax.random.split(key, 3)
    return {
        "W": xavier_uniform(k1, (in_features, out_features)),
        "a": xavier_uniform(k2, (2 * out_features, 1)),
        "fc_W": xavier_uniform(k3, (2 * out_features, out_features)),
    }


def signed_gat_forward(post_id, node_vectors, cos_sim_matrix, adj_matrix,
                       head_params, out_params, alpha, head_tm=None):
    # nn.Embedding.from_pretrained(node_vectors)(arange(node_num)) == node_vectors
    x = node_vectors.astype(jnp.float32)                 # dropout(p=0.0) == id
    # adjacency mask built once as int8 and shared by every attention layer
    potential_adj = jnp.where(cos_sim_matrix > 0.5, 1.0, 0.0)
    adj_mask = ((adj_matrix.astype(jnp.float32) + potential_adj) > 0
                ).astype(jnp.int8)

    head_outs = [
        signed_attention_pallas(x, adj_mask, p["W"], p["a"], p["fc_W"],
                                alpha=alpha, concat=True, tm=head_tm)
        for p in head_params
    ]
    x_cat = jnp.concatenate(head_outs, axis=1)

    # Final layer: compute only the post_id rows.
    return signed_attention_pallas(x_cat, adj_mask, out_params["W"],
                                   out_params["a"], out_params["fc_W"],
                                   alpha=alpha, concat=False,
                                   apply_sigmoid=True, row_sel=post_id)


# ----------------------------------------------------------------------------
# Pure-JAX reference (mirrors the PyTorch math) for a sanity check
# ----------------------------------------------------------------------------
def _signed_attention_ref(x, adj, p, alpha, concat):
    W, a, fc_W = p["W"], p["a"], p["fc_W"]
    F = W.shape[1]
    h = x @ W
    wh1 = h @ a[:F]
    wh2 = h @ a[F:]
    z = wh1 + wh2.T
    e = jnp.where(z > 0, z, alpha * z)
    neg = jnp.full_like(e, -1.0e12)
    att = jax.nn.softmax(jnp.where(adj > 0, e, neg), axis=1)
    natt = -jax.nn.softmax(jnp.where(adj > 0, -e, neg), axis=1)
    out = jnp.concatenate([att @ x, natt @ x], axis=1) @ fc_W
    return jax.nn.elu(out) if concat else out


def signed_gat_ref(post_id, node_vectors, cos_sim_matrix, adj_matrix,
                   head_params, out_params, alpha):
    x = node_vectors.astype(jnp.float32)
    adj = jnp.where(adj_matrix + jnp.where(cos_sim_matrix > 0.5, 1.0, 0.0) > 0,
                    1.0, 0.0)
    x_cat = jnp.concatenate(
        [_signed_attention_ref(x, adj, p, alpha, True) for p in head_params],
        axis=1)
    out = jax.nn.sigmoid(_signed_attention_ref(x_cat, adj, out_params, alpha, False))
    return out[post_id]


# ----------------------------------------------------------------------------
if __name__ == "__main__":
    # Small, self-consistent configuration (see NOTE at top): head_num must be 1
    # and num_features == out_features for the PyTorch forward to type-check.
    node_num = 256
    num_features = 32
    out_features = 32
    head_num = 1
    alpha = 0.3
    # dropout = 0.0  -> identity everywhere

    key = jax.random.PRNGKey(0)
    k_nodes, k_adj, k_heads, k_out = jax.random.split(key, 4)

    node_vectors = jax.random.normal(k_nodes, (node_num, num_features), jnp.float32)
    nrm = node_vectors / (jnp.linalg.norm(node_vectors, axis=1, keepdims=True) + 1e-8)
    cos_sim_matrix = nrm @ nrm.T
    adj_matrix = (jax.random.uniform(k_adj, (node_num, node_num)) < 0.1
                  ).astype(jnp.float32)

    head_keys = jax.random.split(k_heads, head_num)
    head_params = [make_signed_attention_params(hk, num_features, out_features)
                   for hk in head_keys]
    out_params = make_signed_attention_params(k_out, num_features * head_num,
                                              out_features)

    post_id = jnp.array([3, 10, 117], dtype=jnp.int32)

    # head_tm=64 exercises the multi-tile row grid (grid=(4,)) even at demo size.
    result = signed_gat_forward(post_id, node_vectors, cos_sim_matrix, adj_matrix,
                                head_params, out_params, alpha, head_tm=64)
    result = jax.block_until_ready(result)

    reference = signed_gat_ref(post_id, node_vectors, cos_sim_matrix, adj_matrix,
                               head_params, out_params, alpha)
    # bf16 MXU inputs + approx reciprocal -> slightly looser tolerance vs f32 ref
    np.testing.assert_allclose(np.asarray(result), np.asarray(reference),
                               rtol=2e-2, atol=2e-2)

    assert result.shape == (post_id.shape[0], out_features)
    print("KERNEL_OK")
</pallas_src>

<mosaic_0001>
module attributes {stable_mosaic.version = 11 : i64} {
  func.func @_signed_attention_kernel(%arg0: i32, %arg1: memref<64x1xf32, #tpu.memory_space<vmem>>, %arg2: memref<1x256xf32, #tpu.memory_space<vmem>>, %arg3: memref<64x256xi8, #tpu.memory_space<vmem>>, %arg4: memref<256x32xbf16, #tpu.memory_space<vmem>>, %arg5: memref<256x32xbf16, #tpu.memory_space<vmem>>, %arg6: memref<64x32xf32, #tpu.memory_space<vmem>>) attributes {dimension_semantics = [#tpu.dimension_semantics<parallel>], iteration_bounds = array<i64: 4>, scalar_prefetch = 0 : i64, scratch_operands = 0 : i64, tpu.core_type = #tpu.core_type<tc>, window_params = [{transform_indices = @transform_0, window_bounds = array<i64: 64, 1>}, {pipeline_mode = #tpu.pipeline_mode<synchronous>, transform_indices = @transform_1, window_bounds = array<i64: 1, 256>}, {transform_indices = @transform_2, window_bounds = array<i64: 64, 256>}, {pipeline_mode = #tpu.pipeline_mode<synchronous>, transform_indices = @transform_3, window_bounds = array<i64: 256, 32>}, {pipeline_mode = #tpu.pipeline_mode<synchronous>, transform_indices = @transform_4, window_bounds = array<i64: 256, 32>}, {transform_indices = @transform_5, window_bounds = array<i64: 64, 32>}]} {
    %c0 = arith.constant 0 : index
    %c0_0 = arith.constant 0 : index
    %0 = vector.load %arg1[%c0, %c0_0] : memref<64x1xf32, #tpu.memory_space<vmem>>, vector<64x1xf32>
    %c0_1 = arith.constant 0 : index
    %c0_2 = arith.constant 0 : index
    %1 = vector.load %arg2[%c0_1, %c0_2] : memref<1x256xf32, #tpu.memory_space<vmem>>, vector<1x256xf32>
    %2 = vector.broadcast %0 : vector<64x1xf32> to vector<64x256xf32>
    %3 = vector.broadcast %1 : vector<1x256xf32> to vector<64x256xf32>
    %4 = arith.addf %2, %3 : vector<64x256xf32>
    %cst = arith.constant 0.000000e+00 : f32
    %5 = vector.broadcast %cst : f32 to vector<64x256xf32>
    %6 = arith.cmpf ogt, %4, %5 : vector<64x256xf32>
    %cst_3 = arith.constant 3.000000e-01 : f32
    %7 = vector.broadcast %cst_3 : f32 to vector<64x256xf32>
    %8 = arith.mulf %7, %4 : vector<64x256xf32>
    %9 = arith.select %6, %4, %8 : vector<64x256xi1>, vector<64x256xf32>
    %c0_4 = arith.constant 0 : index
    %c0_5 = arith.constant 0 : index
    %10 = vector.load %arg3[%c0_4, %c0_5] : memref<64x256xi8, #tpu.memory_space<vmem>>, vector<64x256xi8>
    %11 = arith.sitofp %10 : vector<64x256xi8> to vector<64x256xf32>
    %cst_6 = arith.constant 0.000000e+00 : f32
    %12 = vector.broadcast %cst_6 : f32 to vector<64x256xf32>
    %13 = arith.cmpf ogt, %11, %12 : vector<64x256xf32>
    %cst_7 = arith.constant -9.99999995E+11 : f32
    %14 = vector.broadcast %cst_7 : f32 to vector<64x256xf32>
    %15 = arith.select %13, %9, %14 : vector<64x256xi1>, vector<64x256xf32>
    %cst_8 = arith.constant 0.000000e+00 : f32
    %16 = vector.broadcast %cst_8 : f32 to vector<64x256xf32>
    %17 = arith.subf %16, %9 : vector<64x256xf32>
    %cst_9 = arith.constant -9.99999995E+11 : f32
    %18 = vector.broadcast %cst_9 : f32 to vector<64x256xf32>
    %19 = arith.select %13, %17, %18 : vector<64x256xi1>, vector<64x256xf32>
    %cst_10 = arith.constant dense<0xFF800000> : vector<64xf32>
    %20 = vector.multi_reduction <maximumf>, %15, %cst_10 [1] : vector<64x256xf32> to vector<64xf32>
    %21 = vector.shape_cast %20 : vector<64xf32> to vector<64x1xf32>
    %22 = vector.broadcast %21 : vector<64x1xf32> to vector<64x256xf32>
    %23 = arith.subf %15, %22 : vector<64x256xf32>
    %24 = math.exp %23 : vector<64x256xf32>
    %cst_11 = arith.constant dense<0xFF800000> : vector<64xf32>
    %25 = vector.multi_reduction <maximumf>, %19, %cst_11 [1] : vector<64x256xf32> to vector<64xf32>
    %26 = vector.shape_cast %25 : vector<64xf32> to vector<64x1xf32>
    %27 = vector.broadcast %26 : vector<64x1xf32> to vector<64x256xf32>
    %28 = arith.subf %19, %27 : vector<64x256xf32>
    %29 = math.exp %28 : vector<64x256xf32>
    %cst_12 = arith.constant dense<0.000000e+00> : vector<64xf32>
    %30 = vector.multi_reduction <add>, %24, %cst_12 [1] : vector<64x256xf32> to vector<64xf32>
    %31 = vector.shape_cast %30 : vector<64xf32> to vector<64x1xf32>
    %32 = tpu.reciprocal %31 {approx = true} : vector<64x1xf32> -> vector<64x1xf32>
    %cst_13 = arith.constant dense<0.000000e+00> : vector<64xf32>
    %33 = vector.multi_reduction <add>, %29, %cst_13 [1] : vector<64x256xf32> to vector<64xf32>
    %34 = vector.shape_cast %33 : vector<64xf32> to vector<64x1xf32>
    %35 = tpu.reciprocal %34 {approx = true} : vector<64x1xf32> -> vector<64x1xf32>
    %36 = vector.broadcast %32 : vector<64x1xf32> to vector<64x256xf32>
    %37 = arith.mulf %24, %36 : vector<64x256xf32>
    %38 = arith.truncf %37 : vector<64x256xf32> to vector<64x256xbf16>
    %39 = vector.broadcast %35 : vector<64x1xf32> to vector<64x256xf32>
    %40 = arith.mulf %29, %39 : vector<64x256xf32>
    %41 = arith.truncf %40 : vector<64x256xf32> to vector<64x256xbf16>
    %c0_14 = arith.constant 0 : index
    %c0_15 = arith.constant 0 : index
    %42 = vector.load %arg4[%c0_14, %c0_15] : memref<256x32xbf16, #tpu.memory_space<vmem>>, vector<256x32xbf16>
    %cst_16 = arith.constant dense<0.000000e+00> : vector<64x32xf32>
    %43 = tpu.matmul %38, %42, %cst_16 {dimension_numbers = #tpu.dot_dimension_numbers<[1], [0], [0], [1], [0, 0, 1, 1], [], []>} : vector<64x256xbf16>, vector<256x32xbf16>, vector<64x32xf32> -> vector<64x32xf32>
    %c0_17 = arith.constant 0 : index
    %c0_18 = arith.constant 0 : index
    %44 = vector.load %arg5[%c0_17, %c0_18] : memref<256x32xbf16, #tpu.memory_space<vmem>>, vector<256x32xbf16>
    %cst_19 = arith.constant dense<0.000000e+00> : vector<64x32xf32>
    %45 = tpu.matmul %41, %44, %cst_19 {dimension_numbers = #tpu.dot_dimension_numbers<[1], [0], [0], [1], [0, 0, 1, 1], [], []>} : vector<64x256xbf16>, vector<256x32xbf16>, vector<64x32xf32> -> vector<64x32xf32>
    %46 = arith.subf %43, %45 : vector<64x32xf32>
    %cst_20 = arith.constant 0.000000e+00 : f32
    %47 = vector.broadcast %cst_20 : f32 to vector<64x32xf32>
    %48 = arith.cmpf ogt, %46, %47 : vector<64x32xf32>
    %49 = math.exp %46 : vector<64x32xf32>
    %cst_21 = arith.constant 1.000000e+00 : f32
    %50 = vector.broadcast %cst_21 : f32 to vector<64x32xf32>
    %51 = arith.subf %49, %50 : vector<64x32xf32>
    %52 = arith.select %48, %46, %51 : vector<64x32xi1>, vector<64x32xf32>
    %c0_22 = arith.constant 0 : index
    %c0_23 = arith.constant 0 : index
    %53 = vector.load %arg6[%c0_22, %c0_23] : memref<64x32xf32, #tpu.memory_space<vmem>>, vector<64x32xf32>
    tpu.vector_store %arg6[%c0_22, %c0_23], %52 {strides = array<i32>} : memref<64x32xf32, #tpu.memory_space<vmem>>, vector<64x32xf32>,
    return
  }
  func.func @transform_0(%arg0: i32) -> (i32, i32) {
    %c0_i32 = arith.constant 0 : i32
    %c0_i32_0 = arith.constant 0 : i32
    return %arg0, %c0_i32 : i32, i32
  }
  func.func @transform_1(%arg0: i32) -> (i32, i32) {
    %c0_i32 = arith.constant 0 : i32
    %c0_i32_0 = arith.constant 0 : i32
    %c0_i32_1 = arith.constant 0 : i32
    return %c0_i32, %c0_i32_0 : i32, i32
  }
  func.func @transform_2(%arg0: i32) -> (i32, i32) {
    %c0_i32 = arith.constant 0 : i32
    %c0_i32_0 = arith.constant 0 : i32
    return %arg0, %c0_i32 : i32, i32
  }
  func.func @transform_3(%arg0: i32) -> (i32, i32) {
    %c0_i32 = arith.constant 0 : i32
    %c0_i32_0 = arith.constant 0 : i32
    %c0_i32_1 = arith.constant 0 : i32
    return %c0_i32, %c0_i32_0 : i32, i32
  }
  func.func @transform_4(%arg0: i32) -> (i32, i32) {
    %c0_i32 = arith.constant 0 : i32
    %c0_i32_0 = arith.constant 0 : i32
    %c0_i32_1 = arith.constant 0 : i32
    return %c0_i32, %c0_i32_0 : i32, i32
  }
  func.func @transform_5(%arg0: i32) -> (i32, i32) {
    %c0_i32 = arith.constant 0 : i32
    %c0_i32_0 = arith.constant 0 : i32
    return %arg0, %c0_i32 : i32, i32
  }
}

</mosaic_0001>

<llo_original>
// kernel: tpu_custom_call.1
$region0: #{tpu_custom_call.1}
  #allocation0 [shape = 'u32[]', space=smem, size = 0x4, offset = 0x4, fixed_abs, tag = 'smem constant byte address 0x4 - core index']
  #allocation1 [shape = 'u32[144,128]{1,0:T(1,128)}', space=vmem, size = 0x12000, scoped, tag = 'internal scratch']
  %s0 = inlined_call_operand.vmem [shape: f32[256,1], index: 0, kind: input, shape index: {}]
  %s1 = inlined_call_operand.vmem [shape: f32[1,256], index: 1, kind: input, shape index: {}]
  %s2 = inlined_call_operand.vmem [shape: s8[256,256], index: 2, kind: input, shape index: {}]
  %s3 = inlined_call_operand.vmem [shape: bf16[256,32], index: 3, kind: input, shape index: {}]
  %s4 = inlined_call_operand.vmem [shape: bf16[256,32], index: 4, kind: input, shape index: {}]
  %s5 = inlined_call_operand.vmem [shape: f32[256,32], index: 5, kind: output, shape index: {}]
  %s6 = sld [smem:[#allocation0]]
  $region53: #{tpu_custom_call.1} parent=0
    _
  %s8 = ssub.s32 1, %s6
  %s9 = scalar_select 0, %s8, %s6
  loop: start=0, step=1, limit=6
  $region2: #{tpu_custom_call.1} parent=0 // loop_pre_header
    _
  $region3: #{tpu_custom_call.1} parent=0 // loop_header
    %s11 = sphi 0, %s15
    %p12 = scmp.ge.s32.totalorder %s11, 6
    %s21 = sphi 0, %s23
    %s24 = sphi 0, %s21
    %s25 = sphi 0, %s24
    %s41 = sphi 0, %s25
    %s45 = sphi 0, %s45
    %s47 = sphi 0, %s45
    %s48 = sphi 0, %s47
    %s62 = sphi 0, %s48
    %s68 = sphi 0, %s70
    %s71 = sphi 0, %s68
    %s72 = sphi 0, %s71
    %s88 = sphi 0, %s72
    %s92 = sphi 0, %s92
    %s94 = sphi 0, %s92
    %s95 = sphi 0, %s94
    %s109 = sphi 0, %s95
    %s113 = sphi 0, %s113
    %s115 = sphi 0, %s113
    %s116 = sphi 0, %s115
    %s130 = sphi 0, %s116
    %s136 = sphi 0, %s138
    %s139 = sphi 0, %s136
    %s140 = sphi 0, %s139
    %s156 = sphi 0, %s140
  $region4: #{tpu_custom_call.1} parent=0 // loop_header_branch
    %14 = sbr.rel (%p12) target = $region8
  $region5: #{tpu_custom_call.1} parent=0 // loop_body
    %s16 = ssub.s32 %s11, 1
    %s17 = ssub.s32 %s11, 2
    %s18 = sadd.s32 %s11, 1
    %s19 = ssub.s32 %s11, %s18
    %p20 = scmp.eq.s32.totalorder %s19, 0
    %s22 = sadd.s32 %s21, 1
    %s23 = scalar_select %p20, %s21, %s22
    %p26 = pneg %p20
    %p27 = scmp.eq.s32.totalorder %s11, 3
    %p28 = por %p26, %p27
    %p29 = scmp.ne.s32.totalorder %s21, %s24
    %p30 = scmp.eq.s32.totalorder %s11, 0
    %p31 = por %p29, %p30
    %p32 = scmp.ne.s32.totalorder %s21, %s24
    %p33 = scmp.eq.s32.totalorder %s16, 3
    %p34 = por %p32, %p33
    %p35 = scmp.ne.s32.totalorder %s24, %s25
    %p36 = scmp.eq.s32.totalorder %s16, 0
    %p37 = por %p35, %p36
    %p38 = scmp.ne.s32.totalorder %s24, %s25
    %p39 = scmp.eq.s32.totalorder %s17, 3
    %p40 = por %p38, %p39
    %p42 = scmp.ne.s32.totalorder %s25, %s41
    %p43 = scmp.eq.s32.totalorder %s17, 0
    %p44 = por %p42, %p43
    %s46 = sadd.s32 %s45, 1
    %p49 = scmp.eq.s32.totalorder %s11, 3
    %p50 = scmp.ne.s32.totalorder %s45, %s47
    %p51 = scmp.eq.s32.totalorder %s11, 0
    %p52 = por %p50, %p51
    %p53 = scmp.ne.s32.totalorder %s45, %s47
    %p54 = scmp.eq.s32.totalorder %s16, 3
    %p55 = por %p53, %p54
    %p56 = scmp.ne.s32.totalorder %s47, %s48
    %p57 = scmp.eq.s32.totalorder %s16, 0
    %p58 = por %p56, %p57
    %p59 = scmp.ne.s32.totalorder %s47, %s48
    %p60 = scmp.eq.s32.totalorder %s17, 3
    %p61 = por %p59, %p60
    %p63 = scmp.ne.s32.totalorder %s48, %s62
    %p64 = scmp.eq.s32.totalorder %s17, 0
    %p65 = por %p63, %p64
    %s66 = ssub.s32 %s11, %s18
    %p67 = scmp.eq.s32.totalorder %s66, 0
    %s69 = sadd.s32 %s68, 1
    %s70 = scalar_select %p67, %s68, %s69
    %p73 = pneg %p67
    %p74 = scmp.eq.s32.totalorder %s11, 3
    %p75 = por %p73, %p74
    %p76 = scmp.ne.s32.totalorder %s68, %s71
    %p77 = scmp.eq.s32.totalorder %s11, 0
    %p78 = por %p76, %p77
    %p79 = scmp.ne.s32.totalorder %s68, %s71
    %p80 = scmp.eq.s32.totalorder %s16, 3
    %p81 = por %p79, %p80
    %p82 = scmp.ne.s32.totalorder %s71, %s72
    %p83 = scmp.eq.s32.totalorder %s16, 0
    %p84 = por %p82, %p83
    %p85 = scmp.ne.s32.totalorder %s71, %s72
    %p86 = scmp.eq.s32.totalorder %s17, 3
    %p87 = por %p85, %p86
    %p89 = scmp.ne.s32.totalorder %s72, %s88
    %p90 = scmp.eq.s32.totalorder %s17, 0
    %p91 = por %p89, %p90
    %s93 = sadd.s32 %s92, 1
    %p96 = scmp.eq.s32.totalorder %s11, 3
    %p97 = scmp.ne.s32.totalorder %s92, %s94
    %p98 = scmp.eq.s32.totalorder %s11, 0
    %p99 = por %p97, %p98
    %p100 = scmp.ne.s32.totalorder %s92, %s94
    %p101 = scmp.eq.s32.totalorder %s16, 3
    %p102 = por %p100, %p101
    %p103 = scmp.ne.s32.totalorder %s94, %s95
    %p104 = scmp.eq.s32.totalorder %s16, 0
    %p105 = por %p103, %p104
    %p106 = scmp.ne.s32.totalorder %s94, %s95
    %p107 = scmp.eq.s32.totalorder %s17, 3
    %p108 = por %p106, %p107
    %p110 = scmp.ne.s32.totalorder %s95, %s109
    %p111 = scmp.eq.s32.totalorder %s17, 0
    %p112 = por %p110, %p111
    %s114 = sadd.s32 %s113, 1
    %p117 = scmp.eq.s32.totalorder %s11, 3
    %p118 = scmp.ne.s32.totalorder %s113, %s115
    %p119 = scmp.eq.s32.totalorder %s11, 0
    %p120 = por %p118, %p119
    %p121 = scmp.ne.s32.totalorder %s113, %s115
    %p122 = scmp.eq.s32.totalorder %s16, 3
    %p123 = por %p121, %p122
    %p124 = scmp.ne.s32.totalorder %s115, %s116
    %p125 = scmp.eq.s32.totalorder %s16, 0
    %p126 = por %p124, %p125
    %p127 = scmp.ne.s32.totalorder %s115, %s116
    %p128 = scmp.eq.s32.totalorder %s17, 3
    %p129 = por %p127, %p128
    %p131 = scmp.ne.s32.totalorder %s116, %s130
    %p132 = scmp.eq.s32.totalorder %s17, 0
    %p133 = por %p131, %p132
    %s134 = ssub.s32 %s11, %s18
    %p135 = scmp.eq.s32.totalorder %s134, 0
    %s137 = sadd.s32 %s136, 1
    %s138 = scalar_select %p135, %s136, %s137
    %p141 = pneg %p135
    %p142 = scmp.eq.s32.totalorder %s11, 3
    %p143 = por %p141, %p142
    %p144 = scmp.ne.s32.totalorder %s136, %s139
    %p145 = scmp.eq.s32.totalorder %s11, 0
    %p146 = por %p144, %p145
    %p147 = scmp.ne.s32.totalorder %s136, %s139
    %p148 = scmp.eq.s32.totalorder %s16, 3
    %p149 = por %p147, %p148
    %p150 = scmp.ne.s32.totalorder %s139, %s140
    %p151 = scmp.eq.s32.totalorder %s16, 0
    %p152 = por %p150, %p151
    %p153 = scmp.ne.s32.totalorder %s139, %s140
    %p154 = scmp.eq.s32.totalorder %s17, 3
    %p155 = por %p153, %p154
    %p157 = scmp.ne.s32.totalorder %s140, %s156
    %p158 = scmp.eq.s32.totalorder %s17, 0
    %p159 = por %p157, %p158
    %p160 = scmp.le.s32.totalorder 1, %s11
    %p161 = scmp.lt.s32.totalorder %s11, 5
    %p162 = pnand %p160, %p161
    %p163 = pneg %p162
    // Predicated region
    $region9: #{tpu_custom_call.1} parent=5 // pred_check
      _
    $region10: #{tpu_custom_call.1} parent=5 // pred_check_branch
      %165 = sbr.rel (%p162) target = $region12
    $region11: #{tpu_custom_call.1} parent=5 // pred_region
      %s166 = ssub.s32 %s11, 1
      // Predicated region
      $region13: #{tpu_custom_call.1} parent=11 // pred_check
        %p167 = pneg %p58
      $region14: #{tpu_custom_call.1} parent=11 // pred_check_branch
        %169 = sbr.rel (%p167) target = $region16
      $region15: #{tpu_custom_call.1} parent=11 // pred_region
        _
      $region16: #{tpu_custom_call.1} parent=11 // pred_fallthru
        _
      // Predicated region
      $region17: #{tpu_custom_call.1} parent=11 // pred_check
        %p170 = pneg %p105
      $region18: #{tpu_custom_call.1} parent=11 // pred_check_branch
        %172 = sbr.rel (%p170) target = $region20
      $region19: #{tpu_custom_call.1} parent=11 // pred_region
        _
      $region20: #{tpu_custom_call.1} parent=11 // pred_fallthru
        _
      // Predicated region
      $region21: #{tpu_custom_call.1} parent=11 // pred_check
        %p173 = pneg %p126
      $region22: #{tpu_custom_call.1} parent=11 // pred_check_branch
        %175 = sbr.rel (%p173) target = $region24
      $region23: #{tpu_custom_call.1} parent=11 // pred_region
        _
      $region24: #{tpu_custom_call.1} parent=11 // pred_fallthru
        _
    $region12: #{tpu_custom_call.1} parent=5 // pred_fallthru
      _
    %p176 = scmp.lt.s32.totalorder %s11, 4
    // Predicated region
    $region25: #{tpu_custom_call.1} parent=5 // pred_check
      %p177 = pneg %p176
    $region26: #{tpu_custom_call.1} parent=5 // pred_check_branch
      %179 = sbr.rel (%p177) target = $region28
    $region27: #{tpu_custom_call.1} parent=5 // pred_region
      // Predicated region
      $region29: #{tpu_custom_call.1} parent=27 // pred_check
        %p180 = pneg %p31
      $region30: #{tpu_custom_call.1} parent=27 // pred_check_branch
        %182 = sbr.rel (%p180) target = $region32
      $region31: #{tpu_custom_call.1} parent=27 // pred_region
        %s183 = smul.u32 8, %s11
        %p184 = scmp.lt.s32.totalorder %s183, 31
        %s185 = scalar_select %p184, %s183, 31
        %s186 = smul.addr %s185, 8
        %s187 = scalar_lea.vmem %s0, %s186
        %s188 = smul.u32 8, %s11
      $region32: #{tpu_custom_call.1} parent=27 // pred_fallthru
        _
      // Predicated region
      $region33: #{tpu_custom_call.1} parent=27 // pred_check
        %p189 = pneg %p78
      $region34: #{tpu_custom_call.1} parent=27 // pred_check_branch
        %191 = sbr.rel (%p189) target = $region36
      $region35: #{tpu_custom_call.1} parent=27 // pred_region
        %s192 = smul.u32 2, %s11
        %p193 = scmp.lt.s32.totalorder %s192, 7
        %s194 = scalar_select %p193, %s192, 7
        %s195 = smul.addr %s194, 2
        %s196 = smul.addr %s195, 8
        %s197 = scalar_lea.vmem %s2, %s196
        %s198 = smul.u32 2, %s11
      $region36: #{tpu_custom_call.1} parent=27 // pred_fallthru
        _
    $region28: #{tpu_custom_call.1} parent=5 // pred_fallthru
      _
    %p199 = scmp.le.s32.totalorder 1, %s11
    %p200 = scmp.lt.s32.totalorder %s11, 5
    %p201 = pnand %p199, %p200
    %p202 = pneg %p201
    // Predicated region
    $region37: #{tpu_custom_call.1} parent=5 // pred_check
      _
    $region38: #{tpu_custom_call.1} parent=5 // pred_check_branch
      %204 = sbr.rel (%p201) target = $region40
    $region39: #{tpu_custom_call.1} parent=5 // pred_region
      %s205 = ssub.s32 %s11, 1
      %s206 = smul.u32 8, %s16
      %p207 = scmp.lt.s32.totalorder %s206, 31
      %s208 = scalar_select %p207, %s206, 31
      %s209 = smul.addr %s208, 8
      %s210 = scalar_lea.vmem %s0, %s209
      %p211 = pneg %p37
      %p212 = pneg %p34
      %p213 = pneg %p58
      %p214 = pneg %p55
      %s215 = smul.u32 2, %s16
      %p216 = scmp.lt.s32.totalorder %s215, 7
      %s217 = scalar_select %p216, %s215, 7
      %s218 = smul.addr %s217, 2
      %s219 = smul.addr %s218, 8
      %s220 = scalar_lea.vmem %s2, %s219
      %p221 = pneg %p84
      %p222 = pneg %p81
      %p223 = pneg %p105
      %p224 = pneg %p102
      %p225 = pneg %p126
      %p226 = pneg %p123
      %p227 = pneg %p152
      %p228 = pneg %p149
      %s229 = smul.u32 8, %s16
      %p230 = scmp.lt.s32.totalorder %s229, 31
      %s231 = scalar_select %p230, %s229, 31
      %s232 = smul.addr %s231, 8
      %s233 = scalar_lea.vmem %s5, %s232
      %s234 = smul.u32 8, %s16
      %p235 = scmp.lt.s32.totalorder %s234, 31
      %s236 = scalar_select %p235, %s234, 31
      %s237 = smul.addr %s236, 8
      %s238 = scalar_lea.vmem %s0, %s237
      %s239 = smul.u32 8, %s16
      %s240 = smul.u32 2, %s16
      %p241 = scmp.lt.s32.totalorder %s240, 7
      %s242 = scalar_select %p241, %s240, 7
      %s243 = smul.addr %s242, 2
      %s244 = smul.addr %s243, 8
      %s245 = scalar_lea.vmem %s2, %s244
      %s246 = smul.u32 2, %s16
      %s247 = smul.u32 8, %s16
      %p248 = scmp.lt.s32.totalorder %s247, 31
      %s249 = scalar_select %p248, %s247, 31
      %s250 = smul.addr %s249, 8
      %s251 = scalar_lea.vmem %s5, %s250
      %s252 = smul.u32 8, %s16
      %v254 = vld [vmem:[%s238] sm:$0xff]
      %v255 = vld [vmem:[%s238 + $0x8] sm:$0xff]
      %v256 = vld [vmem:[%s238 + $0x10] sm:$0xff]
      %v257 = vld [vmem:[%s238 + $0x18] sm:$0xff]
      %v258 = vld [vmem:[%s238 + $0x20] sm:$0xff]
      %v259 = vld [vmem:[%s238 + $0x28] sm:$0xff]
      %v260 = vld [vmem:[%s238 + $0x30] sm:$0xff]
      %v261 = vld [vmem:[%s238 + $0x38] sm:$0xff]
      %v262 = vld [vmem:[%s1] sm:$0x3]
      %264 = vset.pattern.permute.xlu0 0
      %265 = vperm.xlu0 %264, %v254
      %v266 = vpop.permute.xlu0 %265
      %269 = vset.pattern.permute.xlu0 0
      %270 = vperm.xlu0 %269, %v255
      %v271 = vpop.permute.xlu0 %270
      %274 = vset.pattern.permute.xlu0 0
      %275 = vperm.xlu0 %274, %v256
      %v276 = vpop.permute.xlu0 %275
      %279 = vset.pattern.permute.xlu0 0
      %280 = vperm.xlu0 %279, %v257
      %v281 = vpop.permute.xlu0 %280
      %284 = vset.pattern.permute.xlu0 0
      %285 = vperm.xlu0 %284, %v258
      %v286 = vpop.permute.xlu0 %285
      %289 = vset.pattern.permute.xlu0 0
      %290 = vperm.xlu0 %289, %v259
      %v291 = vpop.permute.xlu0 %290
      %294 = vset.pattern.permute.xlu0 0
      %295 = vperm.xlu0 %294, %v260
      %v296 = vpop.permute.xlu0 %295
      %299 = vset.pattern.permute.xlu0 0
      %300 = vperm.xlu0 %299, %v261
      %v301 = vpop.permute.xlu0 %300
      %v304 = vlaneseq
      %v305 = vshrl.u32 %v304, 7
      %v306 = vsub.s32 0, %v305
      %v307 = vrot.slane %v262, %v306
      %v308 = vlaneseq
      %v309 = vshrl.u32 %v308, 7
      %v310 = vsub.s32 1, %v309
      %v311 = vrot.slane %v262, %v310
      %v314 = vadd.f32 %v266, %v307
      %v315 = vadd.f32 %v266, %v311
      %v316 = vadd.f32 %v271, %v307
      %v317 = vadd.f32 %v271, %v311
      %v318 = vadd.f32 %v276, %v307
      %v319 = vadd.f32 %v276, %v311
      %v320 = vadd.f32 %v281, %v307
      %v321 = vadd.f32 %v281, %v311
      %v322 = vadd.f32 %v286, %v307
      %v323 = vadd.f32 %v286, %v311
      %v324 = vadd.f32 %v291, %v307
      %v325 = vadd.f32 %v291, %v311
      %v326 = vadd.f32 %v296, %v307
      %v327 = vadd.f32 %v296, %v311
      %v328 = vadd.f32 %v301, %v307
      %v329 = vadd.f32 %v301, %v311
      %vm330 = vcmp.gt.f32.partialorder %v314, 0.0
      %vm331 = vcmp.gt.f32.partialorder %v315, 0.0
      %vm332 = vcmp.gt.f32.partialorder %v316, 0.0
      %vm333 = vcmp.gt.f32.partialorder %v317, 0.0
      %vm334 = vcmp.gt.f32.partialorder %v318, 0.0
      %vm335 = vcmp.gt.f32.partialorder %v319, 0.0
      %vm336 = vcmp.gt.f32.partialorder %v320, 0.0
      %vm337 = vcmp.gt.f32.partialorder %v321, 0.0
      %vm338 = vcmp.gt.f32.partialorder %v322, 0.0
      %vm339 = vcmp.gt.f32.partialorder %v323, 0.0
      %vm340 = vcmp.gt.f32.partialorder %v324, 0.0
      %vm341 = vcmp.gt.f32.partialorder %v325, 0.0
      %vm342 = vcmp.gt.f32.partialorder %v326, 0.0
      %vm343 = vcmp.gt.f32.partialorder %v327, 0.0
      %vm344 = vcmp.gt.f32.partialorder %v328, 0.0
      %vm345 = vcmp.gt.f32.partialorder %v329, 0.0
      %v346 = vmul.f32 %v314, 0.3
      %v347 = vmul.f32 %v315, 0.3
      %v348 = vmul.f32 %v316, 0.3
      %v349 = vmul.f32 %v317, 0.3
      %v350 = vmul.f32 %v318, 0.3
      %v351 = vmul.f32 %v319, 0.3
      %v352 = vmul.f32 %v320, 0.3
      %v353 = vmul.f32 %v321, 0.3
      %v354 = vmul.f32 %v322, 0.3
      %v355 = vmul.f32 %v323, 0.3
      %v356 = vmul.f32 %v324, 0.3
      %v357 = vmul.f32 %v325, 0.3
      %v358 = vmul.f32 %v326, 0.3
      %v359 = vmul.f32 %v327, 0.3
      %v360 = vmul.f32 %v328, 0.3
      %v361 = vmul.f32 %v329, 0.3
      %v362 = vsel %vm330, %v314, %v346
      %v363 = vsel %vm331, %v315, %v347
      %v364 = vsel %vm332, %v316, %v348
      %v365 = vsel %vm333, %v317, %v349
      %v366 = vsel %vm334, %v318, %v350
      %v367 = vsel %vm335, %v319, %v351
      %v368 = vsel %vm336, %v320, %v352
      %v369 = vsel %vm337, %v321, %v353
      %v370 = vsel %vm338, %v322, %v354
      %v371 = vsel %vm339, %v323, %v355
      %v372 = vsel %vm340, %v324, %v356
      %v373 = vsel %vm341, %v325, %v357
      %v374 = vsel %vm342, %v326, %v358
      %v375 = vsel %vm343, %v327, %v359
      %v376 = vsel %vm344, %v328, %v360
      %v377 = vsel %vm345, %v329, %v361
      %v378 = vld [vmem:[%s245] sm:$0xff]
      %v379 = vld [vmem:[%s245 + $0x8] sm:$0xff]
      %v380 = vld [vmem:[%s245 + $0x10] sm:$0xff]
      %v381 = vld [vmem:[%s245 + $0x18] sm:$0xff]
      %v382 = vunpack.c.0.s8 %v378
      %v383 = vunpack.c.0.s8 %v379
      %v384 = vunpack.c.1.s8 %v378
      %v385 = vunpack.c.1.s8 %v379
      %v386 = vunpack.c.2.s8 %v378
      %v387 = vunpack.c.2.s8 %v379
      %v388 = vunpack.c.3.s8 %v378
      %v389 = vunpack.c.3.s8 %v379
      %v390 = vunpack.c.0.s8 %v380
      %v391 = vunpack.c.0.s8 %v381
      %v392 = vunpack.c.1.s8 %v380
      %v393 = vunpack.c.1.s8 %v381
      %v394 = vunpack.c.2.s8 %v380
      %v395 = vunpack.c.2.s8 %v381
      %v396 = vunpack.c.3.s8 %v380
      %v397 = vunpack.c.3.s8 %v381
      %v398 = vcvt.s32.f32 %v382
      %v399 = vcvt.s32.f32 %v383
      %v400 = vcvt.s32.f32 %v384
      %v401 = vcvt.s32.f32 %v385
      %v402 = vcvt.s32.f32 %v386
      %v403 = vcvt.s32.f32 %v387
      %v404 = vcvt.s32.f32 %v388
      %v405 = vcvt.s32.f32 %v389
      %v406 = vcvt.s32.f32 %v390
      %v407 = vcvt.s32.f32 %v391
      %v408 = vcvt.s32.f32 %v392
      %v409 = vcvt.s32.f32 %v393
      %v410 = vcvt.s32.f32 %v394
      %v411 = vcvt.s32.f32 %v395
      %v412 = vcvt.s32.f32 %v396
      %v413 = vcvt.s32.f32 %v397
      %vm414 = vcmp.gt.f32.partialorder %v398, 0.0
      %vm415 = vcmp.gt.f32.partialorder %v399, 0.0
      %vm416 = vcmp.gt.f32.partialorder %v400, 0.0
      %vm417 = vcmp.gt.f32.partialorder %v401, 0.0
      %vm418 = vcmp.gt.f32.partialorder %v402, 0.0
      %vm419 = vcmp.gt.f32.partialorder %v403, 0.0
      %vm420 = vcmp.gt.f32.partialorder %v404, 0.0
      %vm421 = vcmp.gt.f32.partialorder %v405, 0.0
      %vm422 = vcmp.gt.f32.partialorder %v406, 0.0
      %vm423 = vcmp.gt.f32.partialorder %v407, 0.0
      %vm424 = vcmp.gt.f32.partialorder %v408, 0.0
      %vm425 = vcmp.gt.f32.partialorder %v409, 0.0
      %vm426 = vcmp.gt.f32.partialorder %v410, 0.0
      %vm427 = vcmp.gt.f32.partialorder %v411, 0.0
      %vm428 = vcmp.gt.f32.partialorder %v412, 0.0
      %vm429 = vcmp.gt.f32.partialorder %v413, 0.0
      %v430 = vsel %vm414, %v362, -1e+12
      %v431 = vsel %vm415, %v363, -1e+12
      %v432 = vsel %vm416, %v364, -1e+12
      %v433 = vsel %vm417, %v365, -1e+12
      %v434 = vsel %vm418, %v366, -1e+12
      %v435 = vsel %vm419, %v367, -1e+12
      %v436 = vsel %vm420, %v368, -1e+12
      %v437 = vsel %vm421, %v369, -1e+12
      %v438 = vsel %vm422, %v370, -1e+12
      %v439 = vsel %vm423, %v371, -1e+12
      %v440 = vsel %vm424, %v372, -1e+12
      %v441 = vsel %vm425, %v373, -1e+12
      %v442 = vsel %vm426, %v374, -1e+12
      %v443 = vsel %vm427, %v375, -1e+12
      %v444 = vsel %vm428, %v376, -1e+12
      %v445 = vsel %vm429, %v377, -1e+12
      %v446 = vsub.f32 0.0, %v362
      %v447 = vsub.f32 0.0, %v363
      %v448 = vsub.f32 0.0, %v364
      %v449 = vsub.f32 0.0, %v365
      %v450 = vsub.f32 0.0, %v366
      %v451 = vsub.f32 0.0, %v367
      %v452 = vsub.f32 0.0, %v368
      %v453 = vsub.f32 0.0, %v369
      %v454 = vsub.f32 0.0, %v370
      %v455 = vsub.f32 0.0, %v371
      %v456 = vsub.f32 0.0, %v372
      %v457 = vsub.f32 0.0, %v373
      %v458 = vsub.f32 0.0, %v374
      %v459 = vsub.f32 0.0, %v375
      %v460 = vsub.f32 0.0, %v376
      %v461 = vsub.f32 0.0, %v377
      %v462 = vsel %vm414, %v446, -1e+12
      %v463 = vsel %vm415, %v447, -1e+12
      %v464 = vsel %vm416, %v448, -1e+12
      %v465 = vsel %vm417, %v449, -1e+12
      %v466 = vsel %vm418, %v450, -1e+12
      %v467 = vsel %vm419, %v451, -1e+12
      %v468 = vsel %vm420, %v452, -1e+12
      %v469 = vsel %vm421, %v453, -1e+12
      %v470 = vsel %vm422, %v454, -1e+12
      %v471 = vsel %vm423, %v455, -1e+12
      %v472 = vsel %vm424, %v456, -1e+12
      %v473 = vsel %vm425, %v457, -1e+12
      %v474 = vsel %vm426, %v458, -1e+12
      %v475 = vsel %vm427, %v459, -1e+12
      %v476 = vsel %vm428, %v460, -1e+12
      %v477 = vsel %vm429, %v461, -1e+12
      %v478 = vmax.f32 %v430, %v431
      %479 = vmax.xlane.f32.xlu0 %v478
      %v480 = vpop.xlane.xlu0 %479
      %v481 = vmax.f32 %v432, %v433
      %482 = vmax.xlane.f32.xlu0 %v481
      %v483 = vpop.xlane.xlu0 %482
      %v484 = vmax.f32 %v434, %v435
      %485 = vmax.xlane.f32.xlu0 %v484
      %v486 = vpop.xlane.xlu0 %485
      %v487 = vmax.f32 %v436, %v437
      %488 = vmax.xlane.f32.xlu0 %v487
      %v489 = vpop.xlane.xlu0 %488
      %v490 = vmax.f32 %v438, %v439
      %491 = vmax.xlane.f32.xlu0 %v490
      %v492 = vpop.xlane.xlu0 %491
      %v493 = vmax.f32 %v440, %v441
      %494 = vmax.xlane.f32.xlu0 %v493
      %v495 = vpop.xlane.xlu0 %494
      %v496 = vmax.f32 %v442, %v443
      %497 = vmax.xlane.f32.xlu0 %v496
      %v498 = vpop.xlane.xlu0 %497
      %v499 = vmax.f32 %v444, %v445
      %500 = vmax.xlane.f32.xlu0 %v499
      %v501 = vpop.xlane.xlu0 %500
      %v502 = vsub.f32 %v430, %v480
      %v503 = vsub.f32 %v431, %v480
      %v504 = vsub.f32 %v432, %v483
      %v505 = vsub.f32 %v433, %v483
      %v506 = vsub.f32 %v434, %v486
      %v507 = vsub.f32 %v435, %v486
      %v508 = vsub.f32 %v436, %v489
      %v509 = vsub.f32 %v437, %v489
      %v510 = vsub.f32 %v438, %v492
      %v511 = vsub.f32 %v439, %v492
      %v512 = vsub.f32 %v440, %v495
      %v513 = vsub.f32 %v441, %v495
      %v514 = vsub.f32 %v442, %v498
      %v515 = vsub.f32 %v443, %v498
      %v516 = vsub.f32 %v444, %v501
      %v517 = vsub.f32 %v445, %v501
      %v518 = vmul.f32 %v502, 1.442695
      %v519 = vpow.pop %v518
      %v520 = vmul.f32 %v503, 1.442695
      %v521 = vpow.pop %v520
      %v522 = vmul.f32 %v504, 1.442695
      %v523 = vpow.pop %v522
      %v524 = vmul.f32 %v505, 1.442695
      %v525 = vpow.pop %v524
      %v526 = vmul.f32 %v506, 1.442695
      %v527 = vpow.pop %v526
      %v528 = vmul.f32 %v507, 1.442695
      %v529 = vpow.pop %v528
      %v530 = vmul.f32 %v508, 1.442695
      %v531 = vpow.pop %v530
      %v532 = vmul.f32 %v509, 1.442695
      %v533 = vpow.pop %v532
      %v534 = vmul.f32 %v510, 1.442695
      %v535 = vpow.pop %v534
      %v536 = vmul.f32 %v511, 1.442695
      %v537 = vpow.pop %v536
      %v538 = vmul.f32 %v512, 1.442695
      %v539 = vpow.pop %v538
      %v540 = vmul.f32 %v513, 1.442695
      %v541 = vpow.pop %v540
      %v542 = vmul.f32 %v514, 1.442695
      %v543 = vpow.pop %v542
      %v544 = vmul.f32 %v515, 1.442695
      %v545 = vpow.pop %v544
      %v546 = vmul.f32 %v516, 1.442695
      %v547 = vpow.pop %v546
      %v548 = vmul.f32 %v517, 1.442695
      %v549 = vpow.pop %v548
      %v550 = vmax.f32 %v462, %v463
      %551 = vmax.xlane.f32.xlu0 %v550
      %v552 = vpop.xlane.xlu0 %551
      %v553 = vmax.f32 %v464, %v465
      %554 = vmax.xlane.f32.xlu0 %v553
      %v555 = vpop.xlane.xlu0 %554
      %v556 = vmax.f32 %v466, %v467
      %557 = vmax.xlane.f32.xlu0 %v556
      %v558 = vpop.xlane.xlu0 %557
      %v559 = vmax.f32 %v468, %v469
      %560 = vmax.xlane.f32.xlu0 %v559
      %v561 = vpop.xlane.xlu0 %560
      %v562 = vmax.f32 %v470, %v471
      %563 = vmax.xlane.f32.xlu0 %v562
      %v564 = vpop.xlane.xlu0 %563
      %v565 = vmax.f32 %v472, %v473
      %566 = vmax.xlane.f32.xlu0 %v565
      %v567 = vpop.xlane.xlu0 %566
      %v568 = vmax.f32 %v474, %v475
      %569 = vmax.xlane.f32.xlu0 %v568
      %v570 = vpop.xlane.xlu0 %569
      %v571 = vmax.f32 %v476, %v477
      %572 = vmax.xlane.f32.xlu0 %v571
      %v573 = vpop.xlane.xlu0 %572
      %v574 = vsub.f32 %v462, %v552
      %v575 = vsub.f32 %v463, %v552
      %v576 = vsub.f32 %v464, %v555
      %v577 = vsub.f32 %v465, %v555
      %v578 = vsub.f32 %v466, %v558
      %v579 = vsub.f32 %v467, %v558
      %v580 = vsub.f32 %v468, %v561
      %v581 = vsub.f32 %v469, %v561
      %v582 = vsub.f32 %v470, %v564
      %v583 = vsub.f32 %v471, %v564
      %v584 = vsub.f32 %v472, %v567
      %v585 = vsub.f32 %v473, %v567
      %v586 = vsub.f32 %v474, %v570
      %v587 = vsub.f32 %v475, %v570
      %v588 = vsub.f32 %v476, %v573
      %v589 = vsub.f32 %v477, %v573
      %v590 = vmul.f32 %v574, 1.442695
      %v591 = vpow.pop %v590
      %v592 = vmul.f32 %v575, 1.442695
      %v593 = vpow.pop %v592
      %v594 = vmul.f32 %v576, 1.442695
      %v595 = vpow.pop %v594
      %v596 = vmul.f32 %v577, 1.442695
      %v597 = vpow.pop %v596
      %v598 = vmul.f32 %v578, 1.442695
      %v599 = vpow.pop %v598
      %v600 = vmul.f32 %v579, 1.442695
      %v601 = vpow.pop %v600
      %v602 = vmul.f32 %v580, 1.442695
      %v603 = vpow.pop %v602
      %v604 = vmul.f32 %v581, 1.442695
      %v605 = vpow.pop %v604
      %v606 = vmul.f32 %v582, 1.442695
      %v607 = vpow.pop %v606
      %v608 = vmul.f32 %v583, 1.442695
      %v609 = vpow.pop %v608
      %v610 = vmul.f32 %v584, 1.442695
      %v611 = vpow.pop %v610
      %v612 = vmul.f32 %v585, 1.442695
      %v613 = vpow.pop %v612
      %v614 = vmul.f32 %v586, 1.442695
      %v615 = vpow.pop %v614
      %v616 = vmul.f32 %v587, 1.442695
      %v617 = vpow.pop %v616
      %v618 = vmul.f32 %v588, 1.442695
      %v619 = vpow.pop %v618
      %v620 = vmul.f32 %v589, 1.442695
      %v621 = vpow.pop %v620
      %v622 = vadd.f32 %v519, %v521
      %623 = vadd.xlane.f32.xlu0 %v622
      %v624 = vpop.xlane.xlu0 %623
      %v625 = vadd.f32 %v523, %v525
      %626 = vadd.xlane.f32.xlu0 %v625
      %v627 = vpop.xlane.xlu0 %626
      %v628 = vadd.f32 %v527, %v529
      %629 = vadd.xlane.f32.xlu0 %v628
      %v630 = vpop.xlane.xlu0 %629
      %v631 = vadd.f32 %v531, %v533
      %632 = vadd.xlane.f32.xlu0 %v631
      %v633 = vpop.xlane.xlu0 %632
      %v634 = vadd.f32 %v535, %v537
      %635 = vadd.xlane.f32.xlu0 %v634
      %v636 = vpop.xlane.xlu0 %635
      %v637 = vadd.f32 %v539, %v541
      %638 = vadd.xlane.f32.xlu0 %v637
      %v639 = vpop.xlane.xlu0 %638
      %v640 = vadd.f32 %v543, %v545
      %641 = vadd.xlane.f32.xlu0 %v640
      %v642 = vpop.xlane.xlu0 %641
      %v643 = vadd.f32 %v547, %v549
      %644 = vadd.xlane.f32.xlu0 %v643
      %v645 = vpop.xlane.xlu0 %644
      %v646 = vrcp.pop %v624
      %v647 = vrcp.pop %v627
      %v648 = vrcp.pop %v630
      %v649 = vrcp.pop %v633
      %v650 = vrcp.pop %v636
      %v651 = vrcp.pop %v639
      %v652 = vrcp.pop %v642
      %v653 = vrcp.pop %v645
      %v654 = vadd.f32 %v591, %v593
      %655 = vadd.xlane.f32.xlu0 %v654
      %v656 = vpop.xlane.xlu0 %655
      %v657 = vadd.f32 %v595, %v597
      %658 = vadd.xlane.f32.xlu0 %v657
      %v659 = vpop.xlane.xlu0 %658
      %v660 = vadd.f32 %v599, %v601
      %661 = vadd.xlane.f32.xlu0 %v660
      %v662 = vpop.xlane.xlu0 %661
      %v663 = vadd.f32 %v603, %v605
      %664 = vadd.xlane.f32.xlu0 %v663
      %v665 = vpop.xlane.xlu0 %664
      %v666 = vadd.f32 %v607, %v609
      %667 = vadd.xlane.f32.xlu0 %v666
      %v668 = vpop.xlane.xlu0 %667
      %v669 = vadd.f32 %v611, %v613
      %670 = vadd.xlane.f32.xlu0 %v669
      %v671 = vpop.xlane.xlu0 %670
      %v672 = vadd.f32 %v615, %v617
      %673 = vadd.xlane.f32.xlu0 %v672
      %v674 = vpop.xlane.xlu0 %673
      %v675 = vadd.f32 %v619, %v621
      %676 = vadd.xlane.f32.xlu0 %v675
      %v677 = vpop.xlane.xlu0 %676
      %v678 = vrcp.pop %v656
      %v679 = vrcp.pop %v659
      %v680 = vrcp.pop %v662
      %v681 = vrcp.pop %v665
      %v682 = vrcp.pop %v668
      %v683 = vrcp.pop %v671
      %v684 = vrcp.pop %v674
      %v685 = vrcp.pop %v677
      %v686 = vmul.f32 %v519, %v646
      %v687 = vmul.f32 %v521, %v646
      %v688 = vmul.f32 %v523, %v647
      %v689 = vmul.f32 %v525, %v647
      %v690 = vmul.f32 %v527, %v648
      %v691 = vmul.f32 %v529, %v648
      %v692 = vmul.f32 %v531, %v649
      %v693 = vmul.f32 %v533, %v649
      %v694 = vmul.f32 %v535, %v650
      %v695 = vmul.f32 %v537, %v650
      %v696 = vmul.f32 %v539, %v651
      %v697 = vmul.f32 %v541, %v651
      %v698 = vmul.f32 %v543, %v652
      %v699 = vmul.f32 %v545, %v652
      %v700 = vmul.f32 %v547, %v653
      %v701 = vmul.f32 %v549, %v653
      %v702 = vpack.c.bf16 %v688, %v686
      %v703 = vpack.c.bf16 %v689, %v687
      %v704 = vpack.c.bf16 %v692, %v690
      %v705 = vpack.c.bf16 %v693, %v691
      %v706 = vpack.c.bf16 %v696, %v694
      %v707 = vpack.c.bf16 %v697, %v695
      %v708 = vpack.c.bf16 %v700, %v698
      %v709 = vpack.c.bf16 %v701, %v699
      %v710 = vmul.f32 %v591, %v678
      %v711 = vmul.f32 %v593, %v678
      %v712 = vmul.f32 %v595, %v679
      %v713 = vmul.f32 %v597, %v679
      %v714 = vmul.f32 %v599, %v680
      %v715 = vmul.f32 %v601, %v680
      %v716 = vmul.f32 %v603, %v681
      %v717 = vmul.f32 %v605, %v681
      %v718 = vmul.f32 %v607, %v682
      %v719 = vmul.f32 %v609, %v682
      %v720 = vmul.f32 %v611, %v683
      %v721 = vmul.f32 %v613, %v683
      %v722 = vmul.f32 %v615, %v684
      %v723 = vmul.f32 %v617, %v684
      %v724 = vmul.f32 %v619, %v685
      %v725 = vmul.f32 %v621, %v685
      %v726 = vpack.c.bf16 %v712, %v710
      %v727 = vpack.c.bf16 %v713, %v711
      %v728 = vpack.c.bf16 %v716, %v714
      %v729 = vpack.c.bf16 %v717, %v715
      %v730 = vpack.c.bf16 %v720, %v718
      %v731 = vpack.c.bf16 %v721, %v719
      %v732 = vpack.c.bf16 %v724, %v722
      %v733 = vpack.c.bf16 %v725, %v723
      %v734 = vld [vmem:[%s3] sm:$0xf]
      %v735 = vld [vmem:[%s3 + $0x4] sm:$0xf]
      %v736 = vld [vmem:[%s3 + $0x8] sm:$0xf]
      %v737 = vld [vmem:[%s3 + $0xc] sm:$0xf]
      %v738 = vld [vmem:[%s3 + $0x10] sm:$0xf]
      %v739 = vld [vmem:[%s3 + $0x14] sm:$0xf]
      %v740 = vld [vmem:[%s3 + $0x18] sm:$0xf]
      %v741 = vld [vmem:[%s3 + $0x1c] sm:$0xf]
      %v742 = vld [vmem:[%s3 + $0x20] sm:$0xf]
      %v743 = vld [vmem:[%s3 + $0x24] sm:$0xf]
      %v744 = vld [vmem:[%s3 + $0x28] sm:$0xf]
      %v745 = vld [vmem:[%s3 + $0x2c] sm:$0xf]
      %v746 = vld [vmem:[%s3 + $0x30] sm:$0xf]
      %v747 = vld [vmem:[%s3 + $0x34] sm:$0xf]
      %v748 = vld [vmem:[%s3 + $0x38] sm:$0xf]
      %v749 = vld [vmem:[%s3 + $0x3c] sm:$0xf]
      %v750 = vld [vmem:[%s3 + $0x40] sm:$0xf]
      %v751 = vld [vmem:[%s3 + $0x44] sm:$0xf]
      %v752 = vld [vmem:[%s3 + $0x48] sm:$0xf]
      %v753 = vld [vmem:[%s3 + $0x4c] sm:$0xf]
      %v754 = vld [vmem:[%s3 + $0x50] sm:$0xf]
      %v755 = vld [vmem:[%s3 + $0x54] sm:$0xf]
      %v756 = vld [vmem:[%s3 + $0x58] sm:$0xf]
      %v757 = vld [vmem:[%s3 + $0x5c] sm:$0xf]
      %v758 = vld [vmem:[%s3 + $0x60] sm:$0xf]
      %v759 = vld [vmem:[%s3 + $0x64] sm:$0xf]
      %v760 = vld [vmem:[%s3 + $0x68] sm:$0xf]
      %v761 = vld [vmem:[%s3 + $0x6c] sm:$0xf]
      %v762 = vld [vmem:[%s3 + $0x70] sm:$0xf]
      %v763 = vld [vmem:[%s3 + $0x74] sm:$0xf]
      %v764 = vld [vmem:[%s3 + $0x78] sm:$0xf]
      %v765 = vld [vmem:[%s3 + $0x7c] sm:$0xf]
      %v798 = vunpack.c.l.b16 %v734
      %v799 = vunpack.c.l.b16 %v735
      %v800 = vunpack.c.l.b16 %v736
      %v801 = vunpack.c.l.b16 %v737
      %v802 = vunpack.c.l.b16 %v738
      %v803 = vunpack.c.l.b16 %v739
      %v804 = vunpack.c.l.b16 %v740
      %v805 = vunpack.c.l.b16 %v741
      %v806 = vunpack.c.l.b16 %v742
      %v807 = vunpack.c.l.b16 %v743
      %v808 = vunpack.c.l.b16 %v744
      %v809 = vunpack.c.l.b16 %v745
      %v810 = vunpack.c.l.b16 %v746
      %v811 = vunpack.c.l.b16 %v747
      %v812 = vunpack.c.l.b16 %v748
      %v813 = vunpack.c.l.b16 %v749
      %v814 = vunpack.c.l.b16 %v750
      %v815 = vunpack.c.l.b16 %v751
      %v816 = vunpack.c.l.b16 %v752
      %v817 = vunpack.c.l.b16 %v753
      %v818 = vunpack.c.l.b16 %v754
      %v819 = vunpack.c.l.b16 %v755
      %v820 = vunpack.c.l.b16 %v756
      %v821 = vunpack.c.l.b16 %v757
      %v822 = vunpack.c.l.b16 %v758
      %v823 = vunpack.c.l.b16 %v759
      %v824 = vunpack.c.l.b16 %v760
      %v825 = vunpack.c.l.b16 %v761
      %v826 = vunpack.c.l.b16 %v762
      %v827 = vunpack.c.l.b16 %v763
      %v828 = vunpack.c.l.b16 %v764
      %v829 = vunpack.c.l.b16 %v765
      %v830 = vpack.c.b16 %v799, %v798
      %v831 = vpack.c.b16 %v801, %v800
      %v832 = vpack.c.b16 %v803, %v802
      %v833 = vpack.c.b16 %v805, %v804
      %v834 = vpack.c.b16 %v807, %v806
      %v835 = vpack.c.b16 %v809, %v808
      %v836 = vpack.c.b16 %v811, %v810
      %v837 = vpack.c.b16 %v813, %v812
      %v838 = vpack.c.b16 %v815, %v814
      %v839 = vpack.c.b16 %v817, %v816
      %v840 = vpack.c.b16 %v819, %v818
      %v841 = vpack.c.b16 %v821, %v820
      %v842 = vpack.c.b16 %v823, %v822
      %v843 = vpack.c.b16 %v825, %v824
      %v844 = vpack.c.b16 %v827, %v826
      %v845 = vpack.c.b16 %v829, %v828
      %862 = vmatprep.subr.bf16.mxu0 0
      %863 = vmatpush1.bf16.msra.mxu0 %v830
      %864 = vmatprep.subr.bf16.mxu0 0
      %865 = vmatpush1.bf16.msra.mxu0 %v831
      %866 = vmatprep.subr.bf16.mxu0 0
      %867 = vmatpush1.bf16.msra.mxu0 %v832
      %868 = vmatprep.subr.bf16.mxu0 0
      %869 = vmatpush1.bf16.msra.mxu0 %v833
      %870 = vmatprep.subr.bf16.mxu0 0
      %871 = vmatpush1.bf16.msra.mxu0 %v834
      %872 = vmatprep.subr.bf16.mxu0 0
      %873 = vmatpush1.bf16.msra.mxu0 %v835
      %874 = vmatprep.subr.bf16.mxu0 0
      %875 = vmatpush1.bf16.msra.mxu0 %v836
      %876 = vmatprep.subr.bf16.mxu0 0
      %877 = vmatpush1.bf16.msra.mxu0 %v837
      %878 = vmatprep.subr.bf16.mxu0 0
      %879 = vmatpush1.bf16.msra.mxu0 %v838
      %880 = vmatprep.subr.bf16.mxu0 0
      %881 = vmatpush1.bf16.msra.mxu0 %v839
      %882 = vmatprep.subr.bf16.mxu0 0
      %883 = vmatpush1.bf16.msra.mxu0 %v840
      %884 = vmatprep.subr.bf16.mxu0 0
      %885 = vmatpush1.bf16.msra.mxu0 %v841
      %886 = vmatprep.subr.bf16.mxu0 0
      %887 = vmatpush1.bf16.msra.mxu0 %v842
      %888 = vmatprep.subr.bf16.mxu0 0
      %889 = vmatpush1.bf16.msra.mxu0 %v843
      %890 = vmatprep.subr.bf16.mxu0 0
      %891 = vmatpush1.bf16.msra.mxu0 %v844
      %892 = vmatprep.subr.bf16.mxu0 0
      %893 = vmatpush1.bf16.msra.mxu0 %v845
      %894 = vmatprep.mubr.bf16.mxu0 %v703
      %895 = vmatmul.mubr.bf16.gmra.mrb[0].mxu0 %v702
      %v896 = vpop.f32.mrb[0].mxu0
      %v897 = vadd.f32 0.0, %v896
      %v898 = vpop.f32.mrb[0].mxu0
      %v899 = vpop.f32.mrb[0].mxu0
      %v900 = vadd.f32 0.0, %v899
      %v901 = vpop.f32.mrb[0].mxu0
      %902 = vmatprep.mubr.bf16.mxu0 %v705
      %903 = vmatmul.mubr.bf16.gmra.mrb[0].mxu0 %v704
      %v904 = vpop.f32.mrb[0].mxu0
      %v905 = vadd.f32 0.0, %v904
      %v906 = vpop.f32.mrb[0].mxu0
      %v907 = vpop.f32.mrb[0].mxu0
      %v908 = vadd.f32 0.0, %v907
      %v909 = vpop.f32.mrb[0].mxu0
      %910 = vmatprep.mubr.bf16.mxu0 %v707
      %911 = vmatmul.mubr.bf16.gmra.mrb[0].mxu0 %v706
      %v912 = vpop.f32.mrb[0].mxu0
      %v913 = vadd.f32 0.0, %v912
      %v914 = vpop.f32.mrb[0].mxu0
      %v915 = vpop.f32.mrb[0].mxu0
      %v916 = vadd.f32 0.0, %v915
      %v917 = vpop.f32.mrb[0].mxu0
      %918 = vmatprep.mubr.bf16.mxu0 %v709
      %919 = vmatmul.mubr.bf16.gmra.mrb[0].mxu0 %v708
      %v920 = vpop.f32.mrb[0].mxu0
      %v921 = vadd.f32 0.0, %v920
      %v922 = vpop.f32.mrb[0].mxu0
      %v923 = vpop.f32.mrb[0].mxu0
      %v924 = vadd.f32 0.0, %v923
      %v925 = vpop.f32.mrb[0].mxu0
      %926 = vdwg.mxu0
      %v927 = vld [vmem:[%s4] sm:$0xf]
      %v928 = vld [vmem:[%s4 + $0x4] sm:$0xf]
      %v929 = vld [vmem:[%s4 + $0x8] sm:$0xf]
      %v930 = vld [vmem:[%s4 + $0xc] sm:$0xf]
      %v931 = vld [vmem:[%s4 + $0x10] sm:$0xf]
      %v932 = vld [vmem:[%s4 + $0x14] sm:$0xf]
      %v933 = vld [vmem:[%s4 + $0x18] sm:$0xf]
      %v934 = vld [vmem:[%s4 + $0x1c] sm:$0xf]
      %v935 = vld [vmem:[%s4 + $0x20] sm:$0xf]
      %v936 = vld [vmem:[%s4 + $0x24] sm:$0xf]
      %v937 = vld [vmem:[%s4 + $0x28] sm:$0xf]
      %v938 = vld [vmem:[%s4 + $0x2c] sm:$0xf]
      %v939 = vld [vmem:[%s4 + $0x30] sm:$0xf]
      %v940 = vld [vmem:[%s4 + $0x34] sm:$0xf]
      %v941 = vld [vmem:[%s4 + $0x38] sm:$0xf]
      %v942 = vld [vmem:[%s4 + $0x3c] sm:$0xf]
      %v943 = vld [vmem:[%s4 + $0x40] sm:$0xf]
      %v944 = vld [vmem:[%s4 + $0x44] sm:$0xf]
      %v945 = vld [vmem:[%s4 + $0x48] sm:$0xf]
      %v946 = vld [vmem:[%s4 + $0x4c] sm:$0xf]
      %v947 = vld [vmem:[%s4 + $0x50] sm:$0xf]
      %v948 = vld [vmem:[%s4 + $0x54] sm:$0xf]
      %v949 = vld [vmem:[%s4 + $0x58] sm:$0xf]
      %v950 = vld [vmem:[%s4 + $0x5c] sm:$0xf]
      %v951 = vld [vmem:[%s4 + $0x60] sm:$0xf]
      %v952 = vld [vmem:[%s4 + $0x64] sm:$0xf]
      %v953 = vld [vmem:[%s4 + $0x68] sm:$0xf]
      %v954 = vld [vmem:[%s4 + $0x6c] sm:$0xf]
      %v955 = vld [vmem:[%s4 + $0x70] sm:$0xf]
      %v956 = vld [vmem:[%s4 + $0x74] sm:$0xf]
      %v957 = vld [vmem:[%s4 + $0x78] sm:$0xf]
      %v958 = vld [vmem:[%s4 + $0x7c] sm:$0xf]
      %v991 = vunpack.c.l.b16 %v927
      %v992 = vunpack.c.l.b16 %v928
      %v993 = vunpack.c.l.b16 %v929
      %v994 = vunpack.c.l.b16 %v930
      %v995 = vunpack.c.l.b16 %v931
      %v996 = vunpack.c.l.b16 %v932
      %v997 = vunpack.c.l.b16 %v933
      %v998 = vunpack.c.l.b16 %v934
      %v999 = vunpack.c.l.b16 %v935
      %v1000 = vunpack.c.l.b16 %v936
      %v1001 = vunpack.c.l.b16 %v937
      %v1002 = vunpack.c.l.b16 %v938
      %v1003 = vunpack.c.l.b16 %v939
      %v1004 = vunpack.c.l.b16 %v940
      %v1005 = vunpack.c.l.b16 %v941
      %v1006 = vunpack.c.l.b16 %v942
      %v1007 = vunpack.c.l.b16 %v943
      %v1008 = vunpack.c.l.b16 %v944
      %v1009 = vunpack.c.l.b16 %v945
      %v1010 = vunpack.c.l.b16 %v946
      %v1011 = vunpack.c.l.b16 %v947
      %v1012 = vunpack.c.l.b16 %v948
      %v1013 = vunpack.c.l.b16 %v949
      %v1014 = vunpack.c.l.b16 %v950
      %v1015 = vunpack.c.l.b16 %v951
      %v1016 = vunpack.c.l.b16 %v952
      %v1017 = vunpack.c.l.b16 %v953
      %v1018 = vunpack.c.l.b16 %v954
      %v1019 = vunpack.c.l.b16 %v955
      %v1020 = vunpack.c.l.b16 %v956
      %v1021 = vunpack.c.l.b16 %v957
      %v1022 = vunpack.c.l.b16 %v958
      %v1023 = vpack.c.b16 %v992, %v991
      %v1024 = vpack.c.b16 %v994, %v993
      %v1025 = vpack.c.b16 %v996, %v995
      %v1026 = vpack.c.b16 %v998, %v997
      %v1027 = vpack.c.b16 %v1000, %v999
      %v1028 = vpack.c.b16 %v1002, %v1001
      %v1029 = vpack.c.b16 %v1004, %v1003
      %v1030 = vpack.c.b16 %v1006, %v1005
      %v1031 = vpack.c.b16 %v1008, %v1007
      %v1032 = vpack.c.b16 %v1010, %v1009
      %v1033 = vpack.c.b16 %v1012, %v1011
      %v1034 = vpack.c.b16 %v1014, %v1013
      %v1035 = vpack.c.b16 %v1016, %v1015
      %v1036 = vpack.c.b16 %v1018, %v1017
      %v1037 = vpack.c.b16 %v1020, %v1019
      %v1038 = vpack.c.b16 %v1022, %v1021
      %1055 = vmatprep.subr.bf16.mxu0 0
      %1056 = vmatpush1.bf16.msra.mxu0 %v1023
      %1057 = vmatprep.subr.bf16.mxu0 0
      %1058 = vmatpush1.bf16.msra.mxu0 %v1024
      %1059 = vmatprep.subr.bf16.mxu0 0
      %1060 = vmatpush1.bf16.msra.mxu0 %v1025
      %1061 = vmatprep.subr.bf16.mxu0 0
      %1062 = vmatpush1.bf16.msra.mxu0 %v1026
      %1063 = vmatprep.subr.bf16.mxu0 0
      %1064 = vmatpush1.bf16.msra.mxu0 %v1027
      %1065 = vmatprep.subr.bf16.mxu0 0
      %1066 = vmatpush1.bf16.msra.mxu0 %v1028
      %1067 = vmatprep.subr.bf16.mxu0 0
      %1068 = vmatpush1.bf16.msra.mxu0 %v1029
      %1069 = vmatprep.subr.bf16.mxu0 0
      %1070 = vmatpush1.bf16.msra.mxu0 %v1030
      %1071 = vmatprep.subr.bf16.mxu0 0
      %1072 = vmatpush1.bf16.msra.mxu0 %v1031
      %1073 = vmatprep.subr.bf16.mxu0 0
      %1074 = vmatpush1.bf16.msra.mxu0 %v1032
      %1075 = vmatprep.subr.bf16.mxu0 0
      %1076 = vmatpush1.bf16.msra.mxu0 %v1033
      %1077 = vmatprep.subr.bf16.mxu0 0
      %1078 = vmatpush1.bf16.msra.mxu0 %v1034
      %1079 = vmatprep.subr.bf16.mxu0 0
      %1080 = vmatpush1.bf16.msra.mxu0 %v1035
      %1081 = vmatprep.subr.bf16.mxu0 0
      %1082 = vmatpush1.bf16.msra.mxu0 %v1036
      %1083 = vmatprep.subr.bf16.mxu0 0
      %1084 = vmatpush1.bf16.msra.mxu0 %v1037
      %1085 = vmatprep.subr.bf16.mxu0 0
      %1086 = vmatpush1.bf16.msra.mxu0 %v1038
      %1087 = vmatprep.mubr.bf16.mxu0 %v727
      %1088 = vmatmul.mubr.bf16.gmra.mrb[0].mxu0 %v726
      %v1089 = vpop.f32.mrb[0].mxu0
      %v1090 = vadd.f32 0.0, %v1089
      %v1091 = vpop.f32.mrb[0].mxu0
      %v1092 = vpop.f32.mrb[0].mxu0
      %v1093 = vadd.f32 0.0, %v1092
      %v1094 = vpop.f32.mrb[0].mxu0
      %1095 = vmatprep.mubr.bf16.mxu0 %v729
      %1096 = vmatmul.mubr.bf16.gmra.mrb[0].mxu0 %v728
      %v1097 = vpop.f32.mrb[0].mxu0
      %v1098 = vadd.f32 0.0, %v1097
      %v1099 = vpop.f32.mrb[0].mxu0
      %v1100 = vpop.f32.mrb[0].mxu0
      %v1101 = vadd.f32 0.0, %v1100
      %v1102 = vpop.f32.mrb[0].mxu0
      %1103 = vmatprep.mubr.bf16.mxu0 %v731
      %1104 = vmatmul.mubr.bf16.gmra.mrb[0].mxu0 %v730
      %v1105 = vpop.f32.mrb[0].mxu0
      %v1106 = vadd.f32 0.0, %v1105
      %v1107 = vpop.f32.mrb[0].mxu0
      %v1108 = vpop.f32.mrb[0].mxu0
      %v1109 = vadd.f32 0.0, %v1108
      %v1110 = vpop.f32.mrb[0].mxu0
      %1111 = vmatprep.mubr.bf16.mxu0 %v733
      %1112 = vmatmul.mubr.bf16.gmra.mrb[0].mxu0 %v732
      %v1113 = vpop.f32.mrb[0].mxu0
      %v1114 = vadd.f32 0.0, %v1113
      %v1115 = vpop.f32.mrb[0].mxu0
      %v1116 = vpop.f32.mrb[0].mxu0
      %v1117 = vadd.f32 0.0, %v1116
      %v1118 = vpop.f32.mrb[0].mxu0
      %1119 = vdwg.mxu0
      %v1120 = vsub.f32 %v897, %v1090
      %v1121 = vsub.f32 %v900, %v1093
      %v1122 = vsub.f32 %v905, %v1098
      %v1123 = vsub.f32 %v908, %v1101
      %v1124 = vsub.f32 %v913, %v1106
      %v1125 = vsub.f32 %v916, %v1109
      %v1126 = vsub.f32 %v921, %v1114
      %v1127 = vsub.f32 %v924, %v1117
      %vm1128 = vcmp.gt.f32.partialorder %v1120, 0.0
      %vm1129 = vcmp.gt.f32.partialorder %v1121, 0.0
      %vm1130 = vcmp.gt.f32.partialorder %v1122, 0.0
      %vm1131 = vcmp.gt.f32.partialorder %v1123, 0.0
      %vm1132 = vcmp.gt.f32.partialorder %v1124, 0.0
      %vm1133 = vcmp.gt.f32.partialorder %v1125, 0.0
      %vm1134 = vcmp.gt.f32.partialorder %v1126, 0.0
      %vm1135 = vcmp.gt.f32.partialorder %v1127, 0.0
      %v1136 = vmul.f32 %v1120, 1.442695
      %v1137 = vpow.pop %v1136
      %v1138 = vmul.f32 %v1121, 1.442695
      %v1139 = vpow.pop %v1138
      %v1140 = vmul.f32 %v1122, 1.442695
      %v1141 = vpow.pop %v1140
      %v1142 = vmul.f32 %v1123, 1.442695
      %v1143 = vpow.pop %v1142
      %v1144 = vmul.f32 %v1124, 1.442695
      %v1145 = vpow.pop %v1144
      %v1146 = vmul.f32 %v1125, 1.442695
      %v1147 = vpow.pop %v1146
      %v1148 = vmul.f32 %v1126, 1.442695
      %v1149 = vpow.pop %v1148
      %v1150 = vmul.f32 %v1127, 1.442695
      %v1151 = vpow.pop %v1150
      %v1152 = vsub.f32 %v1137, 1.0
      %v1153 = vsub.f32 %v1139, 1.0
      %v1154 = vsub.f32 %v1141, 1.0
      %v1155 = vsub.f32 %v1143, 1.0
      %v1156 = vsub.f32 %v1145, 1.0
      %v1157 = vsub.f32 %v1147, 1.0
      %v1158 = vsub.f32 %v1149, 1.0
      %v1159 = vsub.f32 %v1151, 1.0
      %v1160 = vsel %vm1128, %v1120, %v1152
      %v1161 = vsel %vm1129, %v1121, %v1153
      %v1162 = vsel %vm1130, %v1122, %v1154
      %v1163 = vsel %vm1131, %v1123, %v1155
      %v1164 = vsel %vm1132, %v1124, %v1156
      %v1165 = vsel %vm1133, %v1125, %v1157
      %v1166 = vsel %vm1134, %v1126, %v1158
      %v1167 = vsel %vm1135, %v1127, %v1159
      %vm1168 = vcmask 261120
      %1169 = vst.msk [vmem:[%s251] sm:$0xff] %vm1168, %v1160
      %1170 = vst.msk [vmem:[%s251 + $0x8] sm:$0xff] %vm1168, %v1161
      %1171 = vst.msk [vmem:[%s251 + $0x10] sm:$0xff] %vm1168, %v1162
      %1172 = vst.msk [vmem:[%s251 + $0x18] sm:$0xff] %vm1168, %v1163
      %1173 = vst.msk [vmem:[%s251 + $0x20] sm:$0xff] %vm1168, %v1164
      %1174 = vst.msk [vmem:[%s251 + $0x28] sm:$0xff] %vm1168, %v1165
      %1175 = vst.msk [vmem:[%s251 + $0x30] sm:$0xff] %vm1168, %v1166
      %1176 = vst.msk [vmem:[%s251 + $0x38] sm:$0xff] %vm1168, %v1167
      %s1177 = smul.u32 8, %s16
      %p1178 = scmp.lt.s32.totalorder %s1177, 31
      %s1179 = scalar_select %p1178, %s1177, 31
      %s1180 = smul.addr %s1179, 8
      %s1181 = scalar_lea.vmem %s5, %s1180
      // Predicated region
      $region41: #{tpu_custom_call.1} parent=39 // pred_check
        %p1182 = pneg %p149
      $region42: #{tpu_custom_call.1} parent=39 // pred_check_branch
        %1184 = sbr.rel (%p1182) target = $region44
      $region43: #{tpu_custom_call.1} parent=39 // pred_region
        %s1185 = smul.u32 8, %s16
      $region44: #{tpu_custom_call.1} parent=39 // pred_fallthru
        _
    $region40: #{tpu_custom_call.1} parent=5 // pred_fallthru
      _
    %p1186 = scmp.le.s32.totalorder 2, %s11
    // Predicated region
    $region45: #{tpu_custom_call.1} parent=5 // pred_check
      %p1187 = pneg %p1186
    $region46: #{tpu_custom_call.1} parent=5 // pred_check_branch
      %1189 = sbr.rel (%p1187) target = $region48
    $region47: #{tpu_custom_call.1} parent=5 // pred_region
      %s1190 = ssub.s32 %s11, 2
      // Predicated region
      $region49: #{tpu_custom_call.1} parent=47 // pred_check
        %p1191 = pneg %p155
      $region50: #{tpu_custom_call.1} parent=47 // pred_check_branch
        %1193 = sbr.rel (%p1191) target = $region52
      $region51: #{tpu_custom_call.1} parent=47 // pred_region
        %s1194 = smul.u32 8, %s17
        %p1195 = scmp.lt.s32.totalorder %s1194, 31
        %s1196 = scalar_select %p1195, %s1194, 31
        %s1197 = smul.addr %s1196, 8
        %s1198 = scalar_lea.vmem %s5, %s1197
      $region52: #{tpu_custom_call.1} parent=47 // pred_fallthru
        _
    $region48: #{tpu_custom_call.1} parent=5 // pred_fallthru
      _
  $region6: #{tpu_custom_call.1} parent=0 // loop_footer
    %s15 = sadd.s32 1, %s11
  $region7: #{tpu_custom_call.1} parent=0 // loop_footer_branch
    %10 = sbr.rel target = $region3
  $region8: #{tpu_custom_call.1} parent=0 // loop_exit
    _

</llo_original>
